<compile_context>
chip_gen: v5e
topology: v5e:2x2
jax: 0.10.0
libtpu: 0.0.40
codegen_flags: <defaults>
</compile_context>

<pallas_src>
import math

import jax
import jax.numpy as jnp
from jax.experimental import pallas as pl
from jax.experimental.pallas import tpu as pltpu

C_IN = 128          # ROI feature channels of the conv trunk
EPS = 1e-5          # BatchNorm1d eps (PyTorch default)
HEAD_PAD = 128      # fused-head output width (lane-dense)
ROW_CAP = 1024      # target rows (M) per MXU matmul tile
MAX_BB = 8          # bound on per-tile batch fan-in (limits in-kernel unroll)


# --------------------------------------------------------------------------- #
# kernels
# --------------------------------------------------------------------------- #
def _rows_channels_last(x_ref, bb):
    """(bb, C, tl) NCL block -> (bb*tl, C) channels-last bf16 rows, built on-chip.

    Per-slab XLU transpose with the bf16 cast folded into the slab so no full
    f32 channels-last copy persists (review item: drop the f32 intermediate)."""
    return jnp.concatenate(
        [x_ref[b].T.astype(jnp.bfloat16) for b in range(bb)], axis=0)


def _make_stats_kernel(total_rows, bb):
    inv_n = 1.0 / float(total_rows)

    def kernel(x_ref, w1_ref, w2_ref, pvec_ref, fold_ref):
        # fold_ref rows: [sum1, sumsq1, sum2, sumsq2, s1, t1, s2, t2]
        phase = pl.program_id(0)
        bt = pl.program_id(1)
        lt = pl.program_id(2)
        is_first = (bt == 0) & (lt == 0)
        is_last = ((bt == pl.num_programs(1) - 1)
                   & (lt == pl.num_programs(2) - 1))

        @pl.when((phase == 0) & is_first)
        def _():
            fold_ref[...] = jnp.zeros_like(fold_ref)

        xb = _rows_channels_last(x_ref, bb)
        y = jnp.dot(xb, w1_ref[...], preferred_element_type=jnp.float32)

        # ---- phase 0: BatchNorm1 statistics (conv bias cancelled by mean-sub)
        @pl.when(phase == 0)
        def _():
            fold_ref[0:1, :] += jnp.sum(y, axis=0, keepdims=True)
            fold_ref[1:2, :] += jnp.sum(y * y, axis=0, keepdims=True)

        @pl.when((phase == 0) & is_last)
        def _():
            mu1 = fold_ref[0:1, :] * inv_n
            var1 = jnp.maximum(fold_ref[1:2, :] * inv_n - mu1 * mu1, 0.0)
            s1 = pvec_ref[0:1, :] * jax.lax.rsqrt(var1 + EPS)     # gamma1 * rsqrt
            fold_ref[4:5, :] = s1
            fold_ref[5:6, :] = pvec_ref[1:2, :] - mu1 * s1        # beta1 - mu1*s1

        # ---- phase 1: apply folded BN1 + ReLU, BatchNorm2 statistics
        @pl.when(phase == 1)
        def _():
            yr = jnp.maximum(y * fold_ref[4:5, :] + fold_ref[5:6, :], 0.0)
            z = jnp.dot(yr.astype(jnp.bfloat16), w2_ref[...],
                        preferred_element_type=jnp.float32)
            fold_ref[2:3, :] += jnp.sum(z, axis=0, keepdims=True)
            fold_ref[3:4, :] += jnp.sum(z * z, axis=0, keepdims=True)

        @pl.when((phase == 1) & is_last)
        def _():
            mu2 = fold_ref[2:3, :] * inv_n
            var2 = jnp.maximum(fold_ref[3:4, :] * inv_n - mu2 * mu2, 0.0)
            s2 = pvec_ref[2:3, :] * jax.lax.rsqrt(var2 + EPS)
            fold_ref[6:7, :] = s2
            fold_ref[7:8, :] = pvec_ref[3:4, :] - mu2 * s2

    return kernel


def _make_apply_kernel(bb):
    def kernel(x_ref, w1_ref, w2_ref, wh_ref, pvec_ref, fold_ref, out_ref):
        tl = x_ref.shape[2]
        xb = _rows_channels_last(x_ref, bb)

        # convs[0..2]: Conv1d(128,128,k=1) + folded BatchNorm1d + ReLU
        y = jnp.dot(xb, w1_ref[...], preferred_element_type=jnp.float32)
        y = jnp.maximum(y * fold_ref[4:5, :] + fold_ref[5:6, :], 0.0)

        # convs[3..5]
        z = jnp.dot(y.astype(jnp.bfloat16), w2_ref[...],
                    preferred_element_type=jnp.float32)
        z = jnp.maximum(z * fold_ref[6:7, :] + fold_ref[7:8, :], 0.0)

        # fused heads: [obj(2) | box(6) | sem_cls | heading_cls | heading_reg | pad]
        h = jnp.dot(z.astype(jnp.bfloat16), wh_ref[...],
                    preferred_element_type=jnp.float32) + pvec_ref[4:5, :]
        # exp() only matters for cols 2..7; full-width exp kept to preserve one
        # unmasked lane-dense store (EUP slack under the mem-bound roofline).
        col = jax.lax.broadcasted_iota(jnp.int32, h.shape, 1)
        h = jnp.where((col >= 2) & (col < 8), jnp.exp(h), h)
        out_ref[...] = h.reshape(bb, tl, HEAD_PAD).astype(out_ref.dtype)

    return kernel


# --------------------------------------------------------------------------- #
# parameters
# --------------------------------------------------------------------------- #
def init_params(key, num_heading_bin, num_class):
    """Deterministic synthetic parameters matching the module __init__ shapes.
    Conv weights stored transposed (Cin, Cout) so the kernel does x @ W."""
    ks = jax.random.split(key, 8)
    p = {}
    std_trunk = math.sqrt(2.0 / C_IN)   # kaiming_normal_(fan_out, relu)
    p["w1"] = jax.random.normal(ks[0], (C_IN, C_IN), jnp.float32) * std_trunk
    p["w2"] = jax.random.normal(ks[1], (C_IN, C_IN), jnp.float32) * std_trunk
    # BatchNorm1d default init
    p["g1"] = jnp.ones((C_IN,), jnp.float32)
    p["be1"] = jnp.zeros((C_IN,), jnp.float32)
    p["g2"] = jnp.ones((C_IN,), jnp.float32)
    p["be2"] = jnp.zeros((C_IN,), jnp.float32)
    # objectness / box predictors: normal(std=0.001), bias 0
    p["wobj"] = jax.random.normal(ks[2], (C_IN, 2), jnp.float32) * 1e-3
    p["bobj"] = jnp.zeros((2,), jnp.float32)
    p["wbox"] = jax.random.normal(ks[3], (C_IN, 6), jnp.float32) * 1e-3
    p["bbox"] = jnp.zeros((6,), jnp.float32)
    # sem_cls / heading predictors: default Conv1d init (~1/sqrt(fan_in))
    s = 1.0 / math.sqrt(C_IN)
    p["wsem"] = jax.random.normal(ks[4], (C_IN, num_class), jnp.float32) * s
    p["bsem"] = jnp.zeros((num_class,), jnp.float32)
    p["whc"] = jax.random.normal(ks[5], (C_IN, num_heading_bin), jnp.float32) * s
    p["bhc"] = jnp.zeros((num_heading_bin,), jnp.float32)
    p["whr"] = jax.random.normal(ks[6], (C_IN, num_heading_bin), jnp.float32) * s
    p["bhr"] = jnp.zeros((num_heading_bin,), jnp.float32)
    return p


def pack_params(p, num_heading_bin, num_class):
    """One-time repack into the kernel operand set (bf16 MXU weights + packed vectors)."""
    total = 2 + 6 + num_class + 2 * num_heading_bin
    assert total <= HEAD_PAD, "fused head width must fit one 128-lane tile"

    w_heads = jnp.concatenate(
        [p["wobj"], p["wbox"], p["wsem"], p["whc"], p["whr"]], axis=1)
    w_heads = jnp.pad(w_heads, ((0, 0), (0, HEAD_PAD - total)))
    b_heads = jnp.concatenate(
        [p["bobj"], p["bbox"], p["bsem"], p["bhc"], p["bhr"]], axis=0)
    b_heads = jnp.pad(b_heads, (0, HEAD_PAD - total))

    # packed per-channel vectors: rows = [g1, be1, g2, be2, head_bias, 0, 0, 0]
    zeros = jnp.zeros((C_IN,), jnp.float32)
    pvec = jnp.stack([p["g1"], p["be1"], p["g2"], p["be2"], b_heads,
                      zeros, zeros, zeros], axis=0)

    return {
        "w1": p["w1"].astype(jnp.bfloat16),
        "w2": p["w2"].astype(jnp.bfloat16),
        "wh": w_heads.astype(jnp.bfloat16),
        "pvec": pvec.astype(jnp.float32),
    }


# --------------------------------------------------------------------------- #
# wrapper
# --------------------------------------------------------------------------- #
def _pick_tile_l(L):
    """Largest divisor of L that is a multiple of 128 (lane-aligned) and <= ROW_CAP;
    otherwise the full axis (block == full dim always satisfies the (8,128) rule)."""
    for tl in range(min(L, ROW_CAP), 0, -1):
        if L % tl == 0 and tl % 128 == 0:
            return tl
    return L


def _pick_bb(B, tl):
    cap = max(1, min(MAX_BB, ROW_CAP // max(tl, 1)))
    for bb in range(min(B, cap), 0, -1):
        if B % bb == 0:
            return bb
    return 1


def _vmem_limit_bytes():
    # Never request more than ~80% of the part's physical VMEM (v7x: 64 MiB/TC,
    # v5e/v6e: 128 MiB).  Fall back conservatively if the query is unavailable.
    try:
        cap = int(pltpu.get_tpu_info().vmem_capacity_bytes)
    except Exception:
        cap = 64 * 2 ** 20
    return max(16 * 2 ** 20, int(cap * 0.8))


def standard_roi_heads_forward(roi_features, packed, num_heading_bin, num_class):
    """roi_features: (B, 128, num_proposal) — same NCL layout as the torch Conv1d input.
    bf16 input is accepted (and preferred for large BL); f32 also works."""
    B, C, L = roi_features.shape
    assert C == C_IN
    BL = B * L
    total = 2 + 6 + num_class + 2 * num_heading_bin
    assert total <= HEAD_PAD

    tl = _pick_tile_l(L)
    bb = _pick_bb(B, tl)
    nb, nl = B // bb, L // tl
    vmem_limit = _vmem_limit_bytes()
    in_bytes = roi_features.dtype.itemsize

    x_spec_s = pl.BlockSpec((bb, C_IN, tl), lambda p, b, l: (b, 0, l))
    x_spec_a = pl.BlockSpec((bb, C_IN, tl), lambda b, l: (b, 0, l))
    w_spec_s = pl.BlockSpec((C_IN, C_IN), lambda p, b, l: (0, 0))   # VMEM-resident
    w_spec_a = pl.BlockSpec((C_IN, C_IN), lambda b, l: (0, 0))
    v_spec_s = pl.BlockSpec((8, C_IN), lambda p, b, l: (0, 0))
    v_spec_a = pl.BlockSpec((8, C_IN), lambda b, l: (0, 0))

    # ---- pass 1: BatchNorm statistics -> folded per-channel scale/shift (8,128)
    fold = pl.pallas_call(
        _make_stats_kernel(BL, bb),
        out_shape=jax.ShapeDtypeStruct((8, C_IN), jnp.float32),
        grid=(2, nb, nl),
        in_specs=[x_spec_s, w_spec_s, w_spec_s, v_spec_s],
        out_specs=v_spec_s,
        compiler_params=pltpu.CompilerParams(
            dimension_semantics=("arbitrary", "arbitrary", "arbitrary"),
            vmem_limit_bytes=vmem_limit),
        cost_estimate=pl.CostEstimate(
            flops=6 * BL * C_IN * C_IN,
            transcendentals=2 * C_IN,
            bytes_accessed=2 * BL * C_IN * in_bytes
            + 2 * C_IN * C_IN * 2 + 2 * 8 * C_IN * 4),
    )(roi_features, packed["w1"], packed["w2"], packed["pvec"])

    # ---- pass 2: apply folded BN + ReLU + fused heads; bf16 lane-dense output
    h = pl.pallas_call(
        _make_apply_kernel(bb),
        out_shape=jax.ShapeDtypeStruct((B, L, HEAD_PAD), jnp.bfloat16),
        grid=(nb, nl),
        in_specs=[x_spec_a, w_spec_a, w_spec_a, w_spec_a, v_spec_a, v_spec_a],
        out_specs=pl.BlockSpec((bb, tl, HEAD_PAD), lambda b, l: (b, l, 0)),
        compiler_params=pltpu.CompilerParams(
            dimension_semantics=("parallel", "parallel"),   # both v7x TensorCores
            vmem_limit_bytes=vmem_limit),
        cost_estimate=pl.CostEstimate(
            flops=2 * BL * C_IN * (2 * C_IN + HEAD_PAD),
            transcendentals=6 * BL,          # only the 6 box columns truly need exp
            bytes_accessed=BL * C_IN * in_bytes + 3 * C_IN * C_IN * 2
            + 2 * 8 * C_IN * 4 + BL * HEAD_PAD * 2),
    )(roi_features, packed["w1"], packed["w2"], packed["wh"],
      packed["pvec"], fold)

    # slice the lane-dense fused output back into the named heads (f32 interface)
    obj = h[..., 0:2].astype(jnp.float32)
    box = h[..., 2:8].astype(jnp.float32)                 # exp already applied in-kernel
    off = 8 + num_class
    hcls = h[..., off:off + num_heading_bin].astype(jnp.float32)
    hreg = h[..., off + num_heading_bin:off + 2 * num_heading_bin].astype(jnp.float32)

    data_dict = {}
    if num_class:
        data_dict["sem_cls_scores"] = h[..., 8:8 + num_class].astype(jnp.float32)
    data_dict["heading_scores"] = hcls
    data_dict["heading_residuals_normalized"] = hreg
    data_dict["heading_residuals"] = hreg * (math.pi / num_heading_bin)
    data_dict["rois"] = box
    data_dict["objectness_scores"] = obj
    # torch returns int64 here; int32 indices are equivalent at these sizes
    data_dict["bbox_mask"] = jnp.argmax(obj, axis=-1)
    return data_dict


# --------------------------------------------------------------------------- #
# pure-JAX reference (f32, same math as the torch module in training mode)
# --------------------------------------------------------------------------- #
def _reference_forward(roi_features, p, num_heading_bin, num_class):
    B, C, L = roi_features.shape
    x = jnp.transpose(roi_features, (0, 2, 1)).reshape(B * L, C).astype(jnp.float32)

    def bn_relu(y, g, b):
        mu = jnp.mean(y, axis=0, keepdims=True)
        var = jnp.mean((y - mu) ** 2, axis=0, keepdims=True)
        return jnp.maximum((y - mu) * jax.lax.rsqrt(var + EPS) * g + b, 0.0)

    y = bn_relu(x @ p["w1"], p["g1"], p["be1"])
    z = bn_relu(y @ p["w2"], p["g2"], p["be2"])
    rs = lambda a: a.reshape(B, L, -1)
    return {
        "objectness_scores": rs(z @ p["wobj"] + p["bobj"]),
        "rois": rs(jnp.exp(z @ p["wbox"] + p["bbox"])),
        "sem_cls_scores": rs(z @ p["wsem"] + p["bsem"]),
        "heading_scores": rs(z @ p["whc"] + p["bhc"]),
    }


if __name__ == "__main__":
    num_heading_bin = 12
    num_class = 18
    B, L = 2, 64                      # small: batch=2, num_proposal=64, channels=128

    key = jax.random.PRNGKey(0)
    k_in, k_par = jax.random.split(key)
    roi_features = jax.random.normal(k_in, (B, C_IN, L), jnp.float32)
    params = init_params(k_par, num_heading_bin, num_class)
    packed = pack_params(params, num_heading_bin, num_class)

    out = standard_roi_heads_forward(roi_features, packed, num_heading_bin, num_class)
    out = jax.tree_util.tree_map(jax.block_until_ready, out)

    # shape sanity checks
    assert out["objectness_scores"].shape == (B, L, 2)
    assert out["rois"].shape == (B, L, 6)
    assert out["sem_cls_scores"].shape == (B, L, num_class)
    assert out["heading_scores"].shape == (B, L, num_heading_bin)
    assert out["heading_residuals_normalized"].shape == (B, L, num_heading_bin)
    assert out["heading_residuals"].shape == (B, L, num_heading_bin)
    assert out["bbox_mask"].shape == (B, L)
    assert bool(jnp.all(out["rois"] > 0.0))          # exp() output must be positive
    assert bool(jnp.all(jnp.isfinite(out["rois"])))

    # numerical sanity vs an f32 reference (bf16 MXU operands -> loose tolerance)
    ref = _reference_forward(roi_features, params, num_heading_bin, num_class)
    for name in ("objectness_scores", "rois", "sem_cls_scores", "heading_scores"):
        assert bool(jnp.allclose(out[name], ref[name], rtol=0.1, atol=0.05)), name

    print("KERNEL_OK")
</pallas_src>

<mosaic_0001>
module attributes {stable_mosaic.version = 11 : i64} {
  func.func @kernel(%arg0: i32, %arg1: i32, %arg2: i32, %arg3: memref<2x128x64xf32, #tpu.memory_space<vmem>>, %arg4: memref<128x128xbf16, #tpu.memory_space<vmem>>, %arg5: memref<128x128xbf16, #tpu.memory_space<vmem>>, %arg6: memref<8x128xf32, #tpu.memory_space<vmem>>, %arg7: memref<8x128xf32, #tpu.memory_space<vmem>>) attributes {dimension_semantics = [#tpu.dimension_semantics<arbitrary>, #tpu.dimension_semantics<arbitrary>, #tpu.dimension_semantics<arbitrary>], iteration_bounds = array<i64: 2, 1, 1>, scalar_prefetch = 0 : i64, scratch_operands = 0 : i64, tpu.core_type = #tpu.core_type<tc>, window_params = [{transform_indices = @transform_0, window_bounds = array<i64: 2, 128, 64>}, {pipeline_mode = #tpu.pipeline_mode<synchronous>, transform_indices = @transform_1, window_bounds = array<i64: 128, 128>}, {pipeline_mode = #tpu.pipeline_mode<synchronous>, transform_indices = @transform_2, window_bounds = array<i64: 128, 128>}, {pipeline_mode = #tpu.pipeline_mode<synchronous>, transform_indices = @transform_3, window_bounds = array<i64: 8, 128>}, {pipeline_mode = #tpu.pipeline_mode<synchronous>, transform_indices = @transform_4, window_bounds = array<i64: 8, 128>}]} {
    %c0_i32 = arith.constant 0 : i32
    %0 = arith.cmpi eq, %arg1, %c0_i32 : i32
    %c0_i32_0 = arith.constant 0 : i32
    %1 = arith.cmpi eq, %arg2, %c0_i32_0 : i32
    %2 = arith.andi %0, %1 : i1
    %c0_i32_1 = arith.constant 0 : i32
    %3 = arith.cmpi eq, %arg1, %c0_i32_1 : i32
    %c0_i32_2 = arith.constant 0 : i32
    %4 = arith.cmpi eq, %arg2, %c0_i32_2 : i32
    %5 = arith.andi %3, %4 : i1
    %c0_i32_3 = arith.constant 0 : i32
    %6 = arith.cmpi eq, %arg0, %c0_i32_3 : i32
    %7 = arith.andi %6, %2 : i1
    %8 = arith.extui %7 : i1 to i32
    %c0_i32_4 = arith.constant 0 : i32
    %9 = arith.cmpi ne, %8, %c0_i32_4 : i32
    scf.if %9 {
      %cst_18 = arith.constant 0.000000e+00 : f32
      %35 = vector.broadcast %cst_18 : f32 to vector<8x128xf32>
      %c0_19 = arith.constant 0 : index
      %c0_20 = arith.constant 0 : index
      %36 = vector.load %arg7[%c0_19, %c0_20] : memref<8x128xf32, #tpu.memory_space<vmem>>, vector<8x128xf32>
      tpu.vector_store %arg7[%c0_19, %c0_20], %35 {strides = array<i32>} : memref<8x128xf32, #tpu.memory_space<vmem>>, vector<8x128xf32>,
    } else {
    }
    %c0 = arith.constant 0 : index
    %c0_5 = arith.constant 0 : index
    %c0_6 = arith.constant 0 : index
    %10 = vector.load %arg3[%c0, %c0_5, %c0_6] : memref<2x128x64xf32, #tpu.memory_space<vmem>>, vector<1x128x64xf32>
    %11 = vector.shape_cast %10 : vector<1x128x64xf32> to vector<128x64xf32>
    %12 = tpu.transpose %11, [1, 0] : vector<128x64xf32> -> vector<64x128xf32>
    %13 = arith.truncf %12 : vector<64x128xf32> to vector<64x128xbf16>
    %c1 = arith.constant 1 : index
    %c0_7 = arith.constant 0 : index
    %c0_8 = arith.constant 0 : index
    %14 = vector.load %arg3[%c1, %c0_7, %c0_8] : memref<2x128x64xf32, #tpu.memory_space<vmem>>, vector<1x128x64xf32>
    %15 = vector.shape_cast %14 : vector<1x128x64xf32> to vector<128x64xf32>
    %16 = tpu.transpose %15, [1, 0] : vector<128x64xf32> -> vector<64x128xf32>
    %17 = arith.truncf %16 : vector<64x128xf32> to vector<64x128xbf16>
    %18 = tpu.concatenate %13, %17 in 0 : vector<64x128xbf16>, vector<64x128xbf16> -> vector<128x128xbf16>
    %c0_9 = arith.constant 0 : index
    %c0_10 = arith.constant 0 : index
    %19 = vector.load %arg4[%c0_9, %c0_10] : memref<128x128xbf16, #tpu.memory_space<vmem>>, vector<128x128xbf16>
    %cst = arith.constant dense<0.000000e+00> : vector<128x128xf32>
    %20 = tpu.matmul %18, %19, %cst {dimension_numbers = #tpu.dot_dimension_numbers<[1], [0], [0], [1], [0, 0, 1, 1], [], []>} : vector<128x128xbf16>, vector<128x128xbf16>, vector<128x128xf32> -> vector<128x128xf32>
    %c0_i32_11 = arith.constant 0 : i32
    %21 = arith.cmpi eq, %arg0, %c0_i32_11 : i32
    %22 = arith.extui %21 : i1 to i32
    %c0_i32_12 = arith.constant 0 : i32
    %23 = arith.cmpi ne, %22, %c0_i32_12 : i32
    scf.if %23 {
      %c0_18 = arith.constant 0 : index
      %c0_19 = arith.constant 0 : index
      %35 = vector.load %arg7[%c0_18, %c0_19] : memref<8x128xf32, #tpu.memory_space<vmem>>, vector<1x128xf32>
      %cst_20 = arith.constant dense<0.000000e+00> : vector<128xf32>
      %36 = vector.multi_reduction <add>, %20, %cst_20 [0] : vector<128x128xf32> to vector<128xf32>
      %37 = vector.shape_cast %36 : vector<128xf32> to vector<1x128xf32>
      %38 = arith.addf %35, %37 : vector<1x128xf32>
      %c0_21 = arith.constant 0 : index
      %c0_22 = arith.constant 0 : index
      %39 = vector.load %arg7[%c0_21, %c0_22] : memref<8x128xf32, #tpu.memory_space<vmem>>, vector<1x128xf32>
      tpu.vector_store %arg7[%c0_21, %c0_22], %38 {strides = array<i32>} : memref<8x128xf32, #tpu.memory_space<vmem>>, vector<1x128xf32>,
      %c1_23 = arith.constant 1 : index
      %c0_24 = arith.constant 0 : index
      %40 = vector.load %arg7[%c1_23, %c0_24] : memref<8x128xf32, #tpu.memory_space<vmem>>, vector<1x128xf32>
      %41 = arith.mulf %20, %20 : vector<128x128xf32>
      %cst_25 = arith.constant dense<0.000000e+00> : vector<128xf32>
      %42 = vector.multi_reduction <add>, %41, %cst_25 [0] : vector<128x128xf32> to vector<128xf32>
      %43 = vector.shape_cast %42 : vector<128xf32> to vector<1x128xf32>
      %44 = arith.addf %40, %43 : vector<1x128xf32>
      %c1_26 = arith.constant 1 : index
      %c0_27 = arith.constant 0 : index
      %45 = vector.load %arg7[%c1_26, %c0_27] : memref<8x128xf32, #tpu.memory_space<vmem>>, vector<1x128xf32>
      tpu.vector_store %arg7[%c1_26, %c0_27], %44 {strides = array<i32>} : memref<8x128xf32, #tpu.memory_space<vmem>>, vector<1x128xf32>,
    } else {
    }
    %c0_i32_13 = arith.constant 0 : i32
    %24 = arith.cmpi eq, %arg0, %c0_i32_13 : i32
    %25 = arith.andi %24, %5 : i1
    %26 = arith.extui %25 : i1 to i32
    %c0_i32_14 = arith.constant 0 : i32
    %27 = arith.cmpi ne, %26, %c0_i32_14 : i32
    scf.if %27 {
      %c0_18 = arith.constant 0 : index
      %c0_19 = arith.constant 0 : index
      %35 = vector.load %arg7[%c0_18, %c0_19] : memref<8x128xf32, #tpu.memory_space<vmem>>, vector<1x128xf32>
      %cst_20 = arith.constant 7.812500e-03 : f32
      %36 = vector.broadcast %cst_20 : f32 to vector<1x128xf32>
      %37 = arith.mulf %35, %36 : vector<1x128xf32>
      %c1_21 = arith.constant 1 : index
      %c0_22 = arith.constant 0 : index
      %38 = vector.load %arg7[%c1_21, %c0_22] : memref<8x128xf32, #tpu.memory_space<vmem>>, vector<1x128xf32>
      %cst_23 = arith.constant 7.812500e-03 : f32
      %39 = vector.broadcast %cst_23 : f32 to vector<1x128xf32>
      %40 = arith.mulf %38, %39 : vector<1x128xf32>
      %41 = arith.mulf %37, %37 : vector<1x128xf32>
      %42 = arith.subf %40, %41 : vector<1x128xf32>
      %cst_24 = arith.constant 0.000000e+00 : f32
      %43 = vector.broadcast %cst_24 : f32 to vector<1x128xf32>
      %44 = arith.maximumf %42, %43 : vector<1x128xf32>
      %c0_25 = arith.constant 0 : index
      %c0_26 = arith.constant 0 : index
      %45 = vector.load %arg6[%c0_25, %c0_26] : memref<8x128xf32, #tpu.memory_space<vmem>>, vector<1x128xf32>
      %cst_27 = arith.constant 9.99999974E-6 : f32
      %46 = vector.broadcast %cst_27 : f32 to vector<1x128xf32>
      %47 = arith.addf %44, %46 : vector<1x128xf32>
      %48 = math.rsqrt %47 : vector<1x128xf32>
      %49 = arith.mulf %45, %48 : vector<1x128xf32>
      %c4 = arith.constant 4 : index
      %c0_28 = arith.constant 0 : index
      %50 = vector.load %arg7[%c4, %c0_28] : memref<8x128xf32, #tpu.memory_space<vmem>>, vector<1x128xf32>
      tpu.vector_store %arg7[%c4, %c0_28], %49 {strides = array<i32>} : memref<8x128xf32, #tpu.memory_space<vmem>>, vector<1x128xf32>,
      %c1_29 = arith.constant 1 : index
      %c0_30 = arith.constant 0 : index
      %51 = vector.load %arg6[%c1_29, %c0_30] : memref<8x128xf32, #tpu.memory_space<vmem>>, vector<1x128xf32>
      %52 = arith.mulf %37, %49 : vector<1x128xf32>
      %53 = arith.subf %51, %52 : vector<1x128xf32>
      %c5 = arith.constant 5 : index
      %c0_31 = arith.constant 0 : index
      %54 = vector.load %arg7[%c5, %c0_31] : memref<8x128xf32, #tpu.memory_space<vmem>>, vector<1x128xf32>
      tpu.vector_store %arg7[%c5, %c0_31], %53 {strides = array<i32>} : memref<8x128xf32, #tpu.memory_space<vmem>>, vector<1x128xf32>,
    } else {
    }
    %c1_i32 = arith.constant 1 : i32
    %28 = arith.cmpi eq, %arg0, %c1_i32 : i32
    %29 = arith.extui %28 : i1 to i32
    %c0_i32_15 = arith.constant 0 : i32
    %30 = arith.cmpi ne, %29, %c0_i32_15 : i32
    scf.if %30 {
      %c4 = arith.constant 4 : index
      %c0_18 = arith.constant 0 : index
      %35 = vector.load %arg7[%c4, %c0_18] : memref<8x128xf32, #tpu.memory_space<vmem>>, vector<1x128xf32>
      %36 = vector.broadcast %35 : vector<1x128xf32> to vector<128x128xf32>
      %37 = arith.mulf %20, %36 : vector<128x128xf32>
      %c5 = arith.constant 5 : index
      %c0_19 = arith.constant 0 : index
      %38 = vector.load %arg7[%c5, %c0_19] : memref<8x128xf32, #tpu.memory_space<vmem>>, vector<1x128xf32>
      %39 = vector.broadcast %38 : vector<1x128xf32> to vector<128x128xf32>
      %40 = arith.addf %37, %39 : vector<128x128xf32>
      %cst_20 = arith.constant 0.000000e+00 : f32
      %41 = vector.broadcast %cst_20 : f32 to vector<128x128xf32>
      %42 = arith.maximumf %40, %41 : vector<128x128xf32>
      %43 = arith.truncf %42 : vector<128x128xf32> to vector<128x128xbf16>
      %c0_21 = arith.constant 0 : index
      %c0_22 = arith.constant 0 : index
      %44 = vector.load %arg5[%c0_21, %c0_22] : memref<128x128xbf16, #tpu.memory_space<vmem>>, vector<128x128xbf16>
      %cst_23 = arith.constant dense<0.000000e+00> : vector<128x128xf32>
      %45 = tpu.matmul %43, %44, %cst_23 {dimension_numbers = #tpu.dot_dimension_numbers<[1], [0], [0], [1], [0, 0, 1, 1], [], []>} : vector<128x128xbf16>, vector<128x128xbf16>, vector<128x128xf32> -> vector<128x128xf32>
      %c2 = arith.constant 2 : index
      %c0_24 = arith.constant 0 : index
      %46 = vector.load %arg7[%c2, %c0_24] : memref<8x128xf32, #tpu.memory_space<vmem>>, vector<1x128xf32>
      %cst_25 = arith.constant dense<0.000000e+00> : vector<128xf32>
      %47 = vector.multi_reduction <add>, %45, %cst_25 [0] : vector<128x128xf32> to vector<128xf32>
      %48 = vector.shape_cast %47 : vector<128xf32> to vector<1x128xf32>
      %49 = arith.addf %46, %48 : vector<1x128xf32>
      %c2_26 = arith.constant 2 : index
      %c0_27 = arith.constant 0 : index
      %50 = vector.load %arg7[%c2_26, %c0_27] : memref<8x128xf32, #tpu.memory_space<vmem>>, vector<1x128xf32>
      tpu.vector_store %arg7[%c2_26, %c0_27], %49 {strides = array<i32>} : memref<8x128xf32, #tpu.memory_space<vmem>>, vector<1x128xf32>,
      %c3 = arith.constant 3 : index
      %c0_28 = arith.constant 0 : index
      %51 = vector.load %arg7[%c3, %c0_28] : memref<8x128xf32, #tpu.memory_space<vmem>>, vector<1x128xf32>
      %52 = arith.mulf %45, %45 : vector<128x128xf32>
      %cst_29 = arith.constant dense<0.000000e+00> : vector<128xf32>
      %53 = vector.multi_reduction <add>, %52, %cst_29 [0] : vector<128x128xf32> to vector<128xf32>
      %54 = vector.shape_cast %53 : vector<128xf32> to vector<1x128xf32>
      %55 = arith.addf %51, %54 : vector<1x128xf32>
      %c3_30 = arith.constant 3 : index
      %c0_31 = arith.constant 0 : index
      %56 = vector.load %arg7[%c3_30, %c0_31] : memref<8x128xf32, #tpu.memory_space<vmem>>, vector<1x128xf32>
      tpu.vector_store %arg7[%c3_30, %c0_31], %55 {strides = array<i32>} : memref<8x128xf32, #tpu.memory_space<vmem>>, vector<1x128xf32>,
    } else {
    }
    %c1_i32_16 = arith.constant 1 : i32
    %31 = arith.cmpi eq, %arg0, %c1_i32_16 : i32
    %32 = arith.andi %31, %5 : i1
    %33 = arith.extui %32 : i1 to i32
    %c0_i32_17 = arith.constant 0 : i32
    %34 = arith.cmpi ne, %33, %c0_i32_17 : i32
    scf.if %34 {
      %c2 = arith.constant 2 : index
      %c0_18 = arith.constant 0 : index
      %35 = vector.load %arg7[%c2, %c0_18] : memref<8x128xf32, #tpu.memory_space<vmem>>, vector<1x128xf32>
      %cst_19 = arith.constant 7.812500e-03 : f32
      %36 = vector.broadcast %cst_19 : f32 to vector<1x128xf32>
      %37 = arith.mulf %35, %36 : vector<1x128xf32>
      %c3 = arith.constant 3 : index
      %c0_20 = arith.constant 0 : index
      %38 = vector.load %arg7[%c3, %c0_20] : memref<8x128xf32, #tpu.memory_space<vmem>>, vector<1x128xf32>
      %cst_21 = arith.constant 7.812500e-03 : f32
      %39 = vector.broadcast %cst_21 : f32 to vector<1x128xf32>
      %40 = arith.mulf %38, %39 : vector<1x128xf32>
      %41 = arith.mulf %37, %37 : vector<1x128xf32>
      %42 = arith.subf %40, %41 : vector<1x128xf32>
      %cst_22 = arith.constant 0.000000e+00 : f32
      %43 = vector.broadcast %cst_22 : f32 to vector<1x128xf32>
      %44 = arith.maximumf %42, %43 : vector<1x128xf32>
      %c2_23 = arith.constant 2 : index
      %c0_24 = arith.constant 0 : index
      %45 = vector.load %arg6[%c2_23, %c0_24] : memref<8x128xf32, #tpu.memory_space<vmem>>, vector<1x128xf32>
      %cst_25 = arith.constant 9.99999974E-6 : f32
      %46 = vector.broadcast %cst_25 : f32 to vector<1x128xf32>
      %47 = arith.addf %44, %46 : vector<1x128xf32>
      %48 = math.rsqrt %47 : vector<1x128xf32>
      %49 = arith.mulf %45, %48 : vector<1x128xf32>
      %c6 = arith.constant 6 : index
      %c0_26 = arith.constant 0 : index
      %50 = vector.load %arg7[%c6, %c0_26] : memref<8x128xf32, #tpu.memory_space<vmem>>, vector<1x128xf32>
      tpu.vector_store %arg7[%c6, %c0_26], %49 {strides = array<i32>} : memref<8x128xf32, #tpu.memory_space<vmem>>, vector<1x128xf32>,
      %c3_27 = arith.constant 3 : index
      %c0_28 = arith.constant 0 : index
      %51 = vector.load %arg6[%c3_27, %c0_28] : memref<8x128xf32, #tpu.memory_space<vmem>>, vector<1x128xf32>
      %52 = arith.mulf %37, %49 : vector<1x128xf32>
      %53 = arith.subf %51, %52 : vector<1x128xf32>
      %c7 = arith.constant 7 : index
      %c0_29 = arith.constant 0 : index
      %54 = vector.load %arg7[%c7, %c0_29] : memref<8x128xf32, #tpu.memory_space<vmem>>, vector<1x128xf32>
      tpu.vector_store %arg7[%c7, %c0_29], %53 {strides = array<i32>} : memref<8x128xf32, #tpu.memory_space<vmem>>, vector<1x128xf32>,
    } else {
    }
    return
  }
  func.func @transform_0(%arg0: i32, %arg1: i32, %arg2: i32) -> (i32, i32, i32) {
    %c0_i32 = arith.constant 0 : i32
    %c0_i32_0 = arith.constant 0 : i32
    return %arg1, %c0_i32, %arg2 : i32, i32, i32
  }
  func.func @transform_1(%arg0: i32, %arg1: i32, %arg2: i32) -> (i32, i32) {
    %c0_i32 = arith.constant 0 : i32
    %c0_i32_0 = arith.constant 0 : i32
    %c0_i32_1 = arith.constant 0 : i32
    return %c0_i32, %c0_i32_0 : i32, i32
  }
  func.func @transform_2(%arg0: i32, %arg1: i32, %arg2: i32) -> (i32, i32) {
    %c0_i32 = arith.constant 0 : i32
    %c0_i32_0 = arith.constant 0 : i32
    %c0_i32_1 = arith.constant 0 : i32
    return %c0_i32, %c0_i32_0 : i32, i32
  }
  func.func @transform_3(%arg0: i32, %arg1: i32, %arg2: i32) -> (i32, i32) {
    %c0_i32 = arith.constant 0 : i32
    %c0_i32_0 = arith.constant 0 : i32
    %c0_i32_1 = arith.constant 0 : i32
    return %c0_i32, %c0_i32_0 : i32, i32
  }
  func.func @transform_4(%arg0: i32, %arg1: i32, %arg2: i32) -> (i32, i32) {
    %c0_i32 = arith.constant 0 : i32
    %c0_i32_0 = arith.constant 0 : i32
    %c0_i32_1 = arith.constant 0 : i32
    return %c0_i32, %c0_i32_0 : i32, i32
  }
}

</mosaic_0001>

<llo_original>
// kernel: tpu_custom_call.1
$region0: #{tpu_custom_call.1}
  #allocation0 [shape = 'u32[]', space=smem, size = 0x4, offset = 0x4, fixed_abs, tag = 'smem constant byte address 0x4 - core index']
  #allocation1 [shape = 'u32[72,128]{1,0:T(1,128)}', space=vmem, size = 0x9000, scoped, tag = 'internal scratch']
  %s0 = inlined_call_operand.vmem [shape: f32[2,128,64], index: 0, kind: input, shape index: {}]
  %s1 = inlined_call_operand.vmem [shape: bf16[128,128], index: 1, kind: input, shape index: {}]
  %s2 = inlined_call_operand.vmem [shape: bf16[128,128], index: 2, kind: input, shape index: {}]
  %s3 = inlined_call_operand.vmem [shape: f32[8,128], index: 3, kind: input, shape index: {}]
  %s4 = inlined_call_operand.hbm [shape: f32[8,128], index: 4, kind: output, shape index: {}]
  %s5 = sld [smem:[#allocation0]]
  $region69: #{tpu_custom_call.1} parent=0
    _
  %s7 = ssub.s32 1, %s5
  %s8 = scalar_select 0, %s7, %s5
  $region1: #{tpu_custom_call.1} parent=0
    #allocation2 [shape = 'u8[4096]{0}', space=vmem, size = 0x1000, scoped, tag = 'output window, operand 0, single buffered']
    #allocation3 [shape = 's32[2]{0}', space=sflag, size = 0x8, scoped, tag = 'scoped memory for tpu_custom_call.1']
    %9 = vsyncpa [#allocation3], 0
    loop: start=0, step=1, limit=4
    $region2: #{tpu_custom_call.1} parent=1 // loop_pre_header
      _
    $region3: #{tpu_custom_call.1} parent=1 // loop_header
      %s11 = sphi 0, %s15
      %p12 = scmp.ge.s32.totalorder %s11, 4
      %s18 = sphi 0, %s37
      %s19 = sphi 0, %s33
      %s20 = sphi 0, %s29
      %s21 = sphi 0, %s18
      %s22 = sphi 0, %s19
      %s23 = sphi 0, %s20
      %s24 = sphi 0, %s21
      %s25 = sphi 0, %s22
      %s26 = sphi 0, %s23
      %s42 = sphi 0, %s44
      %s45 = sphi 0, %s42
      %s46 = sphi 0, %s45
      %s62 = sphi 0, %s46
      %s66 = sphi 0, %s66
      %s68 = sphi 0, %s66
      %s69 = sphi 0, %s68
      %s83 = sphi 0, %s69
      %s87 = sphi 0, %s87
      %s89 = sphi 0, %s87
      %s90 = sphi 0, %s89
      %s104 = sphi 0, %s90
      %s108 = sphi 0, %s108
      %s110 = sphi 0, %s108
      %s111 = sphi 0, %s110
      %s125 = sphi 0, %s111
      %s129 = sphi 0, %s129
      %s131 = sphi 0, %s129
      %s132 = sphi 0, %s131
      %s146 = sphi 0, %s132
    $region4: #{tpu_custom_call.1} parent=1 // loop_header_branch
      %14 = sbr.rel (%p12) target = $region8
    $region5: #{tpu_custom_call.1} parent=1 // loop_body
      %s16 = ssub.s32 %s11, 1
      %s17 = ssub.s32 %s11, 2
      %s27 = sadd.s32 1, %s20
      %p28 = scmp.ge.s32.totalorder %s27, 1
      %s29 = scalar_select %p28, 0, %s27
      %s30 = sadd.s32 1, %s19
      %s31 = scalar_select %p28, %s30, %s19
      %p32 = scmp.ge.s32.totalorder %s31, 1
      %s33 = scalar_select %p32, 0, %s31
      %s34 = sadd.s32 1, %s18
      %s35 = scalar_select %p32, %s34, %s18
      %p36 = scmp.ge.s32.totalorder %s35, 2
      %s37 = scalar_select %p36, 0, %s35
      %s38 = ssub.s32 %s19, %s33
      %s39 = ssub.s32 %s20, %s29
      %s40 = sor.u32 %s38, %s39
      %p41 = scmp.eq.s32.totalorder %s40, 0
      %s43 = sadd.s32 %s42, 1
      %s44 = scalar_select %p41, %s42, %s43
      %p47 = pneg %p41
      %p48 = scmp.eq.s32.totalorder %s11, 1
      %p49 = por %p47, %p48
      %p50 = scmp.ne.s32.totalorder %s42, %s45
      %p51 = scmp.eq.s32.totalorder %s11, 0
      %p52 = por %p50, %p51
      %p53 = scmp.ne.s32.totalorder %s42, %s45
      %p54 = scmp.eq.s32.totalorder %s16, 1
      %p55 = por %p53, %p54
      %p56 = scmp.ne.s32.totalorder %s45, %s46
      %p57 = scmp.eq.s32.totalorder %s16, 0
      %p58 = por %p56, %p57
      %p59 = scmp.ne.s32.totalorder %s45, %s46
      %p60 = scmp.eq.s32.totalorder %s17, 1
      %p61 = por %p59, %p60
      %p63 = scmp.ne.s32.totalorder %s46, %s62
      %p64 = scmp.eq.s32.totalorder %s17, 0
      %p65 = por %p63, %p64
      %s67 = sadd.s32 %s66, 1
      %p70 = scmp.eq.s32.totalorder %s11, 1
      %p71 = scmp.ne.s32.totalorder %s66, %s68
      %p72 = scmp.eq.s32.totalorder %s11, 0
      %p73 = por %p71, %p72
      %p74 = scmp.ne.s32.totalorder %s66, %s68
      %p75 = scmp.eq.s32.totalorder %s16, 1
      %p76 = por %p74, %p75
      %p77 = scmp.ne.s32.totalorder %s68, %s69
      %p78 = scmp.eq.s32.totalorder %s16, 0
      %p79 = por %p77, %p78
      %p80 = scmp.ne.s32.totalorder %s68, %s69
      %p81 = scmp.eq.s32.totalorder %s17, 1
      %p82 = por %p80, %p81
      %p84 = scmp.ne.s32.totalorder %s69, %s83
      %p85 = scmp.eq.s32.totalorder %s17, 0
      %p86 = por %p84, %p85
      %s88 = sadd.s32 %s87, 1
      %p91 = scmp.eq.s32.totalorder %s11, 1
      %p92 = scmp.ne.s32.totalorder %s87, %s89
      %p93 = scmp.eq.s32.totalorder %s11, 0
      %p94 = por %p92, %p93
      %p95 = scmp.ne.s32.totalorder %s87, %s89
      %p96 = scmp.eq.s32.totalorder %s16, 1
      %p97 = por %p95, %p96
      %p98 = scmp.ne.s32.totalorder %s89, %s90
      %p99 = scmp.eq.s32.totalorder %s16, 0
      %p100 = por %p98, %p99
      %p101 = scmp.ne.s32.totalorder %s89, %s90
      %p102 = scmp.eq.s32.totalorder %s17, 1
      %p103 = por %p101, %p102
      %p105 = scmp.ne.s32.totalorder %s90, %s104
      %p106 = scmp.eq.s32.totalorder %s17, 0
      %p107 = por %p105, %p106
      %s109 = sadd.s32 %s108, 1
      %p112 = scmp.eq.s32.totalorder %s11, 1
      %p113 = scmp.ne.s32.totalorder %s108, %s110
      %p114 = scmp.eq.s32.totalorder %s11, 0
      %p115 = por %p113, %p114
      %p116 = scmp.ne.s32.totalorder %s108, %s110
      %p117 = scmp.eq.s32.totalorder %s16, 1
      %p118 = por %p116, %p117
      %p119 = scmp.ne.s32.totalorder %s110, %s111
      %p120 = scmp.eq.s32.totalorder %s16, 0
      %p121 = por %p119, %p120
      %p122 = scmp.ne.s32.totalorder %s110, %s111
      %p123 = scmp.eq.s32.totalorder %s17, 1
      %p124 = por %p122, %p123
      %p126 = scmp.ne.s32.totalorder %s111, %s125
      %p127 = scmp.eq.s32.totalorder %s17, 0
      %p128 = por %p126, %p127
      %s130 = sadd.s32 %s129, 1
      %p133 = scmp.eq.s32.totalorder %s11, 1
      %p134 = scmp.ne.s32.totalorder %s129, %s131
      %p135 = scmp.eq.s32.totalorder %s11, 0
      %p136 = por %p134, %p135
      %p137 = scmp.ne.s32.totalorder %s129, %s131
      %p138 = scmp.eq.s32.totalorder %s16, 1
      %p139 = por %p137, %p138
      %p140 = scmp.ne.s32.totalorder %s131, %s132
      %p141 = scmp.eq.s32.totalorder %s16, 0
      %p142 = por %p140, %p141
      %p143 = scmp.ne.s32.totalorder %s131, %s132
      %p144 = scmp.eq.s32.totalorder %s17, 1
      %p145 = por %p143, %p144
      %p147 = scmp.ne.s32.totalorder %s132, %s146
      %p148 = scmp.eq.s32.totalorder %s17, 0
      %p149 = por %p147, %p148
      %p150 = scmp.le.s32.totalorder 1, %s11
      %p151 = scmp.lt.s32.totalorder %s11, 3
      %p152 = pnand %p150, %p151
      %p153 = pneg %p152
      // Predicated region
      $region9: #{tpu_custom_call.1} parent=5 // pred_check
        _
      $region10: #{tpu_custom_call.1} parent=5 // pred_check_branch
        %155 = sbr.rel (%p152) target = $region12
      $region11: #{tpu_custom_call.1} parent=5 // pred_region
        %s156 = ssub.s32 %s11, 1
        // Predicated region
        $region13: #{tpu_custom_call.1} parent=11 // pred_check
          %p157 = pneg %p58
        $region14: #{tpu_custom_call.1} parent=11 // pred_check_branch
          %159 = sbr.rel (%p157) target = $region16
        $region15: #{tpu_custom_call.1} parent=11 // pred_region
          %s160 = smul.u32 2, %s22
          %p161 = scmp.lt.s32.totalorder %s160, 1
          %s162 = scalar_select %p161, %s160, 1
          %p163 = scmp.lt.s32.totalorder %s23, 0
          %s164 = scalar_select %p163, %s23, 0
          %s165 = smul.addr %s162, 16
          %s166 = sadd.s32 %s164, %s165
          %s167 = smul.addr %s166, 8
          %s168 = scalar_lea.vmem %s0, %s167
          %s169 = smul.u32 2, %s22
        $region16: #{tpu_custom_call.1} parent=11 // pred_fallthru
          _
        // Predicated region
        $region17: #{tpu_custom_call.1} parent=11 // pred_check
          %p170 = pneg %p79
        $region18: #{tpu_custom_call.1} parent=11 // pred_check_branch
          %172 = sbr.rel (%p170) target = $region20
        $region19: #{tpu_custom_call.1} parent=11 // pred_region
          _
        $region20: #{tpu_custom_call.1} parent=11 // pred_fallthru
          _
        // Predicated region
        $region21: #{tpu_custom_call.1} parent=11 // pred_check
          %p173 = pneg %p100
        $region22: #{tpu_custom_call.1} parent=11 // pred_check_branch
          %175 = sbr.rel (%p173) target = $region24
        $region23: #{tpu_custom_call.1} parent=11 // pred_region
          _
        $region24: #{tpu_custom_call.1} parent=11 // pred_fallthru
          _
        // Predicated region
        $region25: #{tpu_custom_call.1} parent=11 // pred_check
          %p176 = pneg %p121
        $region26: #{tpu_custom_call.1} parent=11 // pred_check_branch
          %178 = sbr.rel (%p176) target = $region28
        $region27: #{tpu_custom_call.1} parent=11 // pred_region
          _
        $region28: #{tpu_custom_call.1} parent=11 // pred_fallthru
          _
      $region12: #{tpu_custom_call.1} parent=5 // pred_fallthru
        _
      %p179 = scmp.lt.s32.totalorder %s11, 2
      // Predicated region
      $region29: #{tpu_custom_call.1} parent=5 // pred_check
        %p180 = pneg %p179
      $region30: #{tpu_custom_call.1} parent=5 // pred_check_branch
        %182 = sbr.rel (%p180) target = $region32
      $region31: #{tpu_custom_call.1} parent=5 // pred_region
        _
      $region32: #{tpu_custom_call.1} parent=5 // pred_fallthru
        _
      %p183 = scmp.le.s32.totalorder 1, %s11
      %p184 = scmp.lt.s32.totalorder %s11, 3
      %p185 = pnand %p183, %p184
      %p186 = pneg %p185
      // Predicated region
      $region33: #{tpu_custom_call.1} parent=5 // pred_check
        _
      $region34: #{tpu_custom_call.1} parent=5 // pred_check_branch
        %188 = sbr.rel (%p185) target = $region36
      $region35: #{tpu_custom_call.1} parent=5 // pred_region
        %s189 = ssub.s32 %s11, 1
        %s190 = smul.u32 2, %s22
        %p191 = scmp.lt.s32.totalorder %s190, 1
        %s192 = scalar_select %p191, %s190, 1
        %p193 = scmp.lt.s32.totalorder %s23, 0
        %s194 = scalar_select %p193, %s23, 0
        %s195 = smul.addr %s192, 16
        %s196 = sadd.s32 %s194, %s195
        %s197 = smul.addr %s196, 8
        %s198 = scalar_lea.vmem %s0, %s197
        %p199 = pneg %p58
        %p200 = pneg %p55
        %p201 = pneg %p79
        %p202 = pneg %p76
        %p203 = pneg %p100
        %p204 = pneg %p97
        %p205 = pneg %p121
        %p206 = pneg %p118
        %p207 = pneg %p142
        %p208 = pneg %p139
        %s209 = smul.u32 2, %s22
        %p210 = scmp.lt.s32.totalorder %s209, 1
        %s211 = scalar_select %p210, %s209, 1
        %p212 = scmp.lt.s32.totalorder %s23, 0
        %s213 = scalar_select %p212, %s23, 0
        %s214 = smul.addr %s211, 16
        %s215 = sadd.s32 %s213, %s214
        %s216 = smul.addr %s215, 8
        %s217 = scalar_lea.vmem %s0, %s216
        %s218 = smul.u32 2, %s22
        %p219 = scmp.eq.s32.totalorder %s22, 0
        %p220 = scmp.eq.s32.totalorder %s23, 0
        %p221 = pnand %p219, %p220
        %p222 = pneg %p221
        %p223 = scmp.eq.s32.totalorder %s21, 0
        %p224 = pnand %p223, %p222
        %p225 = pneg %p224
        // Predicated region
        $region37: #{tpu_custom_call.1} parent=35 // pred_check
          _
        $region38: #{tpu_custom_call.1} parent=35 // pred_check_branch
          %227 = sbr.rel (%p224) target = $region40
        $region39: #{tpu_custom_call.1} parent=35 // pred_region
          %228 = vst [vmem:[#allocation2] sm:$0xff] 0.0
        $region40: #{tpu_custom_call.1} parent=35 // pred_fallthru
          _
        %v229 = vld [vmem:[%s217] sm:$0xff]
        %v230 = vld [vmem:[%s217 + $0x8] sm:$0xff]
        %v231 = vld [vmem:[%s217 + $0x10] sm:$0xff]
        %v232 = vld [vmem:[%s217 + $0x18] sm:$0xff]
        %v233 = vld [vmem:[%s217 + $0x20] sm:$0xff]
        %v234 = vld [vmem:[%s217 + $0x28] sm:$0xff]
        %v235 = vld [vmem:[%s217 + $0x30] sm:$0xff]
        %v236 = vld [vmem:[%s217 + $0x38] sm:$0xff]
        %v237 = vld [vmem:[%s217 + $0x40] sm:$0xff]
        %v238 = vld [vmem:[%s217 + $0x48] sm:$0xff]
        %v239 = vld [vmem:[%s217 + $0x50] sm:$0xff]
        %v240 = vld [vmem:[%s217 + $0x58] sm:$0xff]
        %v241 = vld [vmem:[%s217 + $0x60] sm:$0xff]
        %v242 = vld [vmem:[%s217 + $0x68] sm:$0xff]
        %v243 = vld [vmem:[%s217 + $0x70] sm:$0xff]
        %v244 = vld [vmem:[%s217 + $0x78] sm:$0xff]
        %245 = vxpose.xlu0.b32.start [1/16] %v229, 128
        %246 = vxpose.xlu0.b32.cont [2/16] %v230, 128
        %247 = vxpose.xlu0.b32.cont [3/16] %v231, 128
        %248 = vxpose.xlu0.b32.cont [4/16] %v232, 128
        %249 = vxpose.xlu0.b32.cont [5/16] %v233, 128
        %250 = vxpose.xlu0.b32.cont [6/16] %v234, 128
        %251 = vxpose.xlu0.b32.cont [7/16] %v235, 128
        %252 = vxpose.xlu0.b32.cont [8/16] %v236, 128
        %253 = vxpose.xlu0.b32.cont [9/16] %v237, 128
        %254 = vxpose.xlu0.b32.cont [10/16] %v238, 128
        %255 = vxpose.xlu0.b32.cont [11/16] %v239, 128
        %256 = vxpose.xlu0.b32.cont [12/16] %v240, 128
        %257 = vxpose.xlu0.b32.cont [13/16] %v241, 128
        %258 = vxpose.xlu0.b32.cont [14/16] %v242, 128
        %259 = vxpose.xlu0.b32.cont [15/16] %v243, 128
        %260 = vxpose.xlu0.b32.end [16/16] %v244, 128
        %v261 = vpop.trf.xlu0
        %v262 = vpop.trf.xlu0
        %v263 = vpop.trf.xlu0
        %v264 = vpop.trf.xlu0
        %v265 = vpop.trf.xlu0
        %v266 = vpop.trf.xlu0
        %v267 = vpop.trf.xlu0
        %v268 = vpop.trf.xlu0
        %v269 = vpop.trf.xlu0
        %v270 = vpop.trf.xlu0
        %v271 = vpop.trf.xlu0
        %v272 = vpop.trf.xlu0
        %v273 = vpop.trf.xlu0
        %v274 = vpop.trf.xlu0
        %v275 = vpop.trf.xlu0
        %v276 = vpop.trf.xlu0
        %v277 = vpack.c.bf16 %v261, %v261
        %v278 = vpack.c.bf16 %v262, %v262
        %v279 = vpack.c.bf16 %v263, %v263
        %v280 = vpack.c.bf16 %v264, %v264
        %v281 = vpack.c.bf16 %v265, %v265
        %v282 = vpack.c.bf16 %v266, %v266
        %v283 = vpack.c.bf16 %v267, %v267
        %v284 = vpack.c.bf16 %v268, %v268
        %s285 = scalar_lea.vmem %s217, 128
        %v286 = vld [vmem:[%s285] sm:$0xff]
        %v287 = vld [vmem:[%s285 + $0x8] sm:$0xff]
        %v288 = vld [vmem:[%s285 + $0x10] sm:$0xff]
        %v289 = vld [vmem:[%s285 + $0x18] sm:$0xff]
        %v290 = vld [vmem:[%s285 + $0x20] sm:$0xff]
        %v291 = vld [vmem:[%s285 + $0x28] sm:$0xff]
        %v292 = vld [vmem:[%s285 + $0x30] sm:$0xff]
        %v293 = vld [vmem:[%s285 + $0x38] sm:$0xff]
        %v294 = vld [vmem:[%s285 + $0x40] sm:$0xff]
        %v295 = vld [vmem:[%s285 + $0x48] sm:$0xff]
        %v296 = vld [vmem:[%s285 + $0x50] sm:$0xff]
        %v297 = vld [vmem:[%s285 + $0x58] sm:$0xff]
        %v298 = vld [vmem:[%s285 + $0x60] sm:$0xff]
        %v299 = vld [vmem:[%s285 + $0x68] sm:$0xff]
        %v300 = vld [vmem:[%s285 + $0x70] sm:$0xff]
        %v301 = vld [vmem:[%s285 + $0x78] sm:$0xff]
        %302 = vxpose.xlu0.b32.start [1/16] %v286, 128
        %303 = vxpose.xlu0.b32.cont [2/16] %v287, 128
        %304 = vxpose.xlu0.b32.cont [3/16] %v288, 128
        %305 = vxpose.xlu0.b32.cont [4/16] %v289, 128
        %306 = vxpose.xlu0.b32.cont [5/16] %v290, 128
        %307 = vxpose.xlu0.b32.cont [6/16] %v291, 128
        %308 = vxpose.xlu0.b32.cont [7/16] %v292, 128
        %309 = vxpose.xlu0.b32.cont [8/16] %v293, 128
        %310 = vxpose.xlu0.b32.cont [9/16] %v294, 128
        %311 = vxpose.xlu0.b32.cont [10/16] %v295, 128
        %312 = vxpose.xlu0.b32.cont [11/16] %v296, 128
        %313 = vxpose.xlu0.b32.cont [12/16] %v297, 128
        %314 = vxpose.xlu0.b32.cont [13/16] %v298, 128
        %315 = vxpose.xlu0.b32.cont [14/16] %v299, 128
        %316 = vxpose.xlu0.b32.cont [15/16] %v300, 128
        %317 = vxpose.xlu0.b32.end [16/16] %v301, 128
        %v318 = vpop.trf.xlu0
        %v319 = vpop.trf.xlu0
        %v320 = vpop.trf.xlu0
        %v321 = vpop.trf.xlu0
        %v322 = vpop.trf.xlu0
        %v323 = vpop.trf.xlu0
        %v324 = vpop.trf.xlu0
        %v325 = vpop.trf.xlu0
        %v326 = vpop.trf.xlu0
        %v327 = vpop.trf.xlu0
        %v328 = vpop.trf.xlu0
        %v329 = vpop.trf.xlu0
        %v330 = vpop.trf.xlu0
        %v331 = vpop.trf.xlu0
        %v332 = vpop.trf.xlu0
        %v333 = vpop.trf.xlu0
        %v334 = vpack.c.bf16 %v318, %v318
        %v335 = vpack.c.bf16 %v319, %v319
        %v336 = vpack.c.bf16 %v320, %v320
        %v337 = vpack.c.bf16 %v321, %v321
        %v338 = vpack.c.bf16 %v322, %v322
        %v339 = vpack.c.bf16 %v323, %v323
        %v340 = vpack.c.bf16 %v324, %v324
        %v341 = vpack.c.bf16 %v325, %v325
        %v350 = vunpack.c.l.b16 %v277
        %v351 = vunpack.c.l.b16 %v278
        %v352 = vunpack.c.l.b16 %v279
        %v353 = vunpack.c.l.b16 %v280
        %v354 = vunpack.c.l.b16 %v281
        %v355 = vunpack.c.l.b16 %v282
        %v356 = vunpack.c.l.b16 %v283
        %v357 = vunpack.c.l.b16 %v284
        %v358 = vpack.c.b16 %v351, %v350
        %v359 = vpack.c.b16 %v353, %v352
        %v360 = vpack.c.b16 %v355, %v354
        %v361 = vpack.c.b16 %v357, %v356
        %v374 = vunpack.c.l.b16 %v334
        %v375 = vunpack.c.l.b16 %v335
        %v376 = vunpack.c.l.b16 %v336
        %v377 = vunpack.c.l.b16 %v337
        %v378 = vunpack.c.l.b16 %v338
        %v379 = vunpack.c.l.b16 %v339
        %v380 = vunpack.c.l.b16 %v340
        %v381 = vunpack.c.l.b16 %v341
        %v382 = vpack.c.b16 %v375, %v374
        %v383 = vpack.c.b16 %v377, %v376
        %v384 = vpack.c.b16 %v379, %v378
        %v385 = vpack.c.b16 %v381, %v380
        %v390 = vld [vmem:[%s1] sm:$0xf]
        %v391 = vld [vmem:[%s1 + $0x4] sm:$0xf]
        %v392 = vld [vmem:[%s1 + $0x8] sm:$0xf]
        %v393 = vld [vmem:[%s1 + $0xc] sm:$0xf]
        %v394 = vld [vmem:[%s1 + $0x10] sm:$0xf]
        %v395 = vld [vmem:[%s1 + $0x14] sm:$0xf]
        %v396 = vld [vmem:[%s1 + $0x18] sm:$0xf]
        %v397 = vld [vmem:[%s1 + $0x1c] sm:$0xf]
        %v398 = vld [vmem:[%s1 + $0x20] sm:$0xf]
        %v399 = vld [vmem:[%s1 + $0x24] sm:$0xf]
        %v400 = vld [vmem:[%s1 + $0x28] sm:$0xf]
        %v401 = vld [vmem:[%s1 + $0x2c] sm:$0xf]
        %v402 = vld [vmem:[%s1 + $0x30] sm:$0xf]
        %v403 = vld [vmem:[%s1 + $0x34] sm:$0xf]
        %v404 = vld [vmem:[%s1 + $0x38] sm:$0xf]
        %v405 = vld [vmem:[%s1 + $0x3c] sm:$0xf]
        %v422 = vunpack.c.l.b16 %v390
        %v423 = vunpack.c.l.b16 %v391
        %v424 = vunpack.c.l.b16 %v392
        %v425 = vunpack.c.l.b16 %v393
        %v426 = vunpack.c.l.b16 %v394
        %v427 = vunpack.c.l.b16 %v395
        %v428 = vunpack.c.l.b16 %v396
        %v429 = vunpack.c.l.b16 %v397
        %v430 = vunpack.c.l.b16 %v398
        %v431 = vunpack.c.l.b16 %v399
        %v432 = vunpack.c.l.b16 %v400
        %v433 = vunpack.c.l.b16 %v401
        %v434 = vunpack.c.l.b16 %v402
        %v435 = vunpack.c.l.b16 %v403
        %v436 = vunpack.c.l.b16 %v404
        %v437 = vunpack.c.l.b16 %v405
        %v438 = vpack.c.b16 %v423, %v422
        %v439 = vpack.c.b16 %v425, %v424
        %v440 = vpack.c.b16 %v427, %v426
        %v441 = vpack.c.b16 %v429, %v428
        %v442 = vpack.c.b16 %v431, %v430
        %v443 = vpack.c.b16 %v433, %v432
        %v444 = vpack.c.b16 %v435, %v434
        %v445 = vpack.c.b16 %v437, %v436
        %454 = vmatpush.bf16.msra.mxu0 %v445
        %455 = vmatpush.bf16.msra.mxu0 %v444
        %456 = vmatpush.bf16.msra.mxu0 %v443
        %457 = vmatpush.bf16.msra.mxu0 %v442
        %458 = vmatpush.bf16.msra.mxu0 %v441
        %459 = vmatpush.bf16.msra.mxu0 %v440
        %460 = vmatpush.bf16.msra.mxu0 %v439
        %461 = vmatpush.bf16.msra.mxu0 %v438
        %462 = vmatmul.bf16.gmra.mxu0 %v358
        %v463 = vpop.f32.mrf.mxu0
        %v464 = vadd.f32 0.0, %v463
        %v465 = vpop.f32.mrf.mxu0
        %v466 = vadd.f32 0.0, %v465
        %467 = vmatmul.bf16.gmra.mxu0 %v359
        %v468 = vpop.f32.mrf.mxu0
        %v469 = vadd.f32 0.0, %v468
        %v470 = vpop.f32.mrf.mxu0
        %v471 = vadd.f32 0.0, %v470
        %472 = vmatmul.bf16.gmra.mxu0 %v360
        %v473 = vpop.f32.mrf.mxu0
        %v474 = vadd.f32 0.0, %v473
        %v475 = vpop.f32.mrf.mxu0
        %v476 = vadd.f32 0.0, %v475
        %477 = vmatmul.bf16.gmra.mxu0 %v361
        %v478 = vpop.f32.mrf.mxu0
        %v479 = vadd.f32 0.0, %v478
        %v480 = vpop.f32.mrf.mxu0
        %v481 = vadd.f32 0.0, %v480
        %482 = vmatmul.bf16.gmra.mxu0 %v382
        %v483 = vpop.f32.mrf.mxu0
        %v484 = vadd.f32 0.0, %v483
        %v485 = vpop.f32.mrf.mxu0
        %v486 = vadd.f32 0.0, %v485
        %487 = vmatmul.bf16.gmra.mxu0 %v383
        %v488 = vpop.f32.mrf.mxu0
        %v489 = vadd.f32 0.0, %v488
        %v490 = vpop.f32.mrf.mxu0
        %v491 = vadd.f32 0.0, %v490
        %492 = vmatmul.bf16.gmra.mxu0 %v384
        %v493 = vpop.f32.mrf.mxu0
        %v494 = vadd.f32 0.0, %v493
        %v495 = vpop.f32.mrf.mxu0
        %v496 = vadd.f32 0.0, %v495
        %497 = vmatmul.bf16.gmra.mxu0 %v385
        %v498 = vpop.f32.mrf.mxu0
        %v499 = vadd.f32 0.0, %v498
        %v500 = vpop.f32.mrf.mxu0
        %v501 = vadd.f32 0.0, %v500
        %502 = vdwg.mxu0
        // Predicated region
        $region41: #{tpu_custom_call.1} parent=35 // pred_check
          %p503 = pneg %p223
        $region42: #{tpu_custom_call.1} parent=35 // pred_check_branch
          %505 = sbr.rel (%p503) target = $region44
        $region43: #{tpu_custom_call.1} parent=35 // pred_region
          %v506 = vld [vmem:[#allocation2] sm:$0x1]
          %v507 = vadd.f32 %v464, %v466
          %v508 = vadd.f32 %v507, %v469
          %v509 = vadd.f32 %v508, %v471
          %v510 = vadd.f32 %v509, %v474
          %v511 = vadd.f32 %v510, %v476
          %v512 = vadd.f32 %v511, %v479
          %v513 = vadd.f32 %v512, %v481
          %v514 = vadd.f32 %v513, %v484
          %v515 = vadd.f32 %v514, %v486
          %v516 = vadd.f32 %v515, %v489
          %v517 = vadd.f32 %v516, %v491
          %v518 = vadd.f32 %v517, %v494
          %v519 = vadd.f32 %v518, %v496
          %v520 = vadd.f32 %v519, %v499
          %v521 = vadd.f32 %v520, %v501
          %v522 = vrot.slane %v521, 4
          %v523 = vadd.f32 %v521, %v522
          %v524 = vrot.slane %v523, 2
          %v525 = vadd.f32 %v523, %v524
          %v526 = vrot.slane %v525, 1
          %v527 = vadd.f32 %v525, %v526
          %v528 = vadd.f32 %v506, %v527
          %529 = vst [vmem:[#allocation2] sm:$0x1] %v528
          %v530 = vld [vmem:[#allocation2 + $0x1] sm:$0x1]
          %v531 = vmul.f32 %v464, %v464
          %v532 = vmul.f32 %v466, %v466
          %v533 = vmul.f32 %v469, %v469
          %v534 = vmul.f32 %v471, %v471
          %v535 = vmul.f32 %v474, %v474
          %v536 = vmul.f32 %v476, %v476
          %v537 = vmul.f32 %v479, %v479
          %v538 = vmul.f32 %v481, %v481
          %v539 = vmul.f32 %v484, %v484
          %v540 = vmul.f32 %v486, %v486
          %v541 = vmul.f32 %v489, %v489
          %v542 = vmul.f32 %v491, %v491
          %v543 = vmul.f32 %v494, %v494
          %v544 = vmul.f32 %v496, %v496
          %v545 = vmul.f32 %v499, %v499
          %v546 = vmul.f32 %v501, %v501
          %v547 = vadd.f32 %v531, %v532
          %v548 = vadd.f32 %v547, %v533
          %v549 = vadd.f32 %v548, %v534
          %v550 = vadd.f32 %v549, %v535
          %v551 = vadd.f32 %v550, %v536
          %v552 = vadd.f32 %v551, %v537
          %v553 = vadd.f32 %v552, %v538
          %v554 = vadd.f32 %v553, %v539
          %v555 = vadd.f32 %v554, %v540
          %v556 = vadd.f32 %v555, %v541
          %v557 = vadd.f32 %v556, %v542
          %v558 = vadd.f32 %v557, %v543
          %v559 = vadd.f32 %v558, %v544
          %v560 = vadd.f32 %v559, %v545
          %v561 = vadd.f32 %v560, %v546
          %v562 = vrot.slane %v561, 4
          %v563 = vadd.f32 %v561, %v562
          %v564 = vrot.slane %v563, 2
          %v565 = vadd.f32 %v563, %v564
          %v566 = vrot.slane %v565, 1
          %v567 = vadd.f32 %v565, %v566
          %v568 = vadd.f32 %v530, %v567
          %569 = vst [vmem:[#allocation2 + $0x1] sm:$0x1] %v568
        $region44: #{tpu_custom_call.1} parent=35 // pred_fallthru
          _
        // Predicated region
        $region45: #{tpu_custom_call.1} parent=35 // pred_check
          _
        $region46: #{tpu_custom_call.1} parent=35 // pred_check_branch
          %571 = sbr.rel (%p224) target = $region48
        $region47: #{tpu_custom_call.1} parent=35 // pred_region
          %v572 = vld [vmem:[#allocation2] sm:$0x1]
          %v573 = vmul.f32 %v572, 0.0078125
          %v574 = vld [vmem:[#allocation2 + $0x1] sm:$0x1]
          %v575 = vmul.f32 %v574, 0.0078125
          %v576 = vmul.f32 %v573, %v573
          %v577 = vsub.f32 %v575, %v576
          %v578 = vmax.f32 %v577, 0.0
          %v579 = vld [vmem:[%s3] sm:$0x1]
          %v580 = vadd.f32 %v578, 1e-05
          %v581 = vrsqrt.pop %v580
          %v582 = vmul.f32 %v581, %v580
          %v583 = vmul.f32 %v582, %v581
          %v584 = vmul.f32 0.5, %v583
          %v585 = vsub.f32 1.5, %v584
          %v586 = vmul.f32 %v581, %v585
          %vm587 = vweird.f32 %v580
          %vm588 = vweird.f32 %v581
          %vm589 = vmor %vm587, %vm588
          %v590 = vsel %vm589, %v581, %v586
          %v591 = vmul.f32 %v579, %v590
          %592 = vst [vmem:[#allocation2 + $0x4] sm:$0x1] %v591
          %v593 = vld [vmem:[%s3 + $0x1] sm:$0x1]
          %v594 = vmul.f32 %v573, %v591
          %v595 = vsub.f32 %v593, %v594
          %596 = vst [vmem:[#allocation2 + $0x5] sm:$0x1] %v595
        $region48: #{tpu_custom_call.1} parent=35 // pred_fallthru
          _
        %p597 = scmp.eq.s32.totalorder %s21, 1
        // Predicated region
        $region49: #{tpu_custom_call.1} parent=35 // pred_check
          %p598 = pneg %p597
        $region50: #{tpu_custom_call.1} parent=35 // pred_check_branch
          %600 = sbr.rel (%p598) target = $region52
        $region51: #{tpu_custom_call.1} parent=35 // pred_region
          %v601 = vld [vmem:[#allocation2 + $0x4] sm:$0x1]
          %v602 = vperm.slane %v601, 0
          %v603 = vmul.f32 %v464, %v602
          %v604 = vmul.f32 %v466, %v602
          %v605 = vmul.f32 %v469, %v602
          %v606 = vmul.f32 %v471, %v602
          %v607 = vmul.f32 %v474, %v602
          %v608 = vmul.f32 %v476, %v602
          %v609 = vmul.f32 %v479, %v602
          %v610 = vmul.f32 %v481, %v602
          %v611 = vmul.f32 %v484, %v602
          %v612 = vmul.f32 %v486, %v602
          %v613 = vmul.f32 %v489, %v602
          %v614 = vmul.f32 %v491, %v602
          %v615 = vmul.f32 %v494, %v602
          %v616 = vmul.f32 %v496, %v602
          %v617 = vmul.f32 %v499, %v602
          %v618 = vmul.f32 %v501, %v602
          %v619 = vld [vmem:[#allocation2 + $0x5] sm:$0x1]
          %v620 = vperm.slane %v619, 0
          %v621 = vadd.f32 %v603, %v620
          %v622 = vadd.f32 %v604, %v620
          %v623 = vadd.f32 %v605, %v620
          %v624 = vadd.f32 %v606, %v620
          %v625 = vadd.f32 %v607, %v620
          %v626 = vadd.f32 %v608, %v620
          %v627 = vadd.f32 %v609, %v620
          %v628 = vadd.f32 %v610, %v620
          %v629 = vadd.f32 %v611, %v620
          %v630 = vadd.f32 %v612, %v620
          %v631 = vadd.f32 %v613, %v620
          %v632 = vadd.f32 %v614, %v620
          %v633 = vadd.f32 %v615, %v620
          %v634 = vadd.f32 %v616, %v620
          %v635 = vadd.f32 %v617, %v620
          %v636 = vadd.f32 %v618, %v620
          %v637 = vmax.f32 %v621, 0.0
          %v638 = vmax.f32 %v622, 0.0
          %v639 = vmax.f32 %v623, 0.0
          %v640 = vmax.f32 %v624, 0.0
          %v641 = vmax.f32 %v625, 0.0
          %v642 = vmax.f32 %v626, 0.0
          %v643 = vmax.f32 %v627, 0.0
          %v644 = vmax.f32 %v628, 0.0
          %v645 = vmax.f32 %v629, 0.0
          %v646 = vmax.f32 %v630, 0.0
          %v647 = vmax.f32 %v631, 0.0
          %v648 = vmax.f32 %v632, 0.0
          %v649 = vmax.f32 %v633, 0.0
          %v650 = vmax.f32 %v634, 0.0
          %v651 = vmax.f32 %v635, 0.0
          %v652 = vmax.f32 %v636, 0.0
          %v653 = vpack.c.bf16 %v638, %v637
          %v654 = vpack.c.bf16 %v640, %v639
          %v655 = vpack.c.bf16 %v642, %v641
          %v656 = vpack.c.bf16 %v644, %v643
          %v657 = vpack.c.bf16 %v646, %v645
          %v658 = vpack.c.bf16 %v648, %v647
          %v659 = vpack.c.bf16 %v650, %v649
          %v660 = vpack.c.bf16 %v652, %v651
          %v661 = vld [vmem:[%s2] sm:$0xf]
          %v662 = vld [vmem:[%s2 + $0x4] sm:$0xf]
          %v663 = vld [vmem:[%s2 + $0x8] sm:$0xf]
          %v664 = vld [vmem:[%s2 + $0xc] sm:$0xf]
          %v665 = vld [vmem:[%s2 + $0x10] sm:$0xf]
          %v666 = vld [vmem:[%s2 + $0x14] sm:$0xf]
          %v667 = vld [vmem:[%s2 + $0x18] sm:$0xf]
          %v668 = vld [vmem:[%s2 + $0x1c] sm:$0xf]
          %v669 = vld [vmem:[%s2 + $0x20] sm:$0xf]
          %v670 = vld [vmem:[%s2 + $0x24] sm:$0xf]
          %v671 = vld [vmem:[%s2 + $0x28] sm:$0xf]
          %v672 = vld [vmem:[%s2 + $0x2c] sm:$0xf]
          %v673 = vld [vmem:[%s2 + $0x30] sm:$0xf]
          %v674 = vld [vmem:[%s2 + $0x34] sm:$0xf]
          %v675 = vld [vmem:[%s2 + $0x38] sm:$0xf]
          %v676 = vld [vmem:[%s2 + $0x3c] sm:$0xf]
          %v693 = vunpack.c.l.b16 %v661
          %v694 = vunpack.c.l.b16 %v662
          %v695 = vunpack.c.l.b16 %v663
          %v696 = vunpack.c.l.b16 %v664
          %v697 = vunpack.c.l.b16 %v665
          %v698 = vunpack.c.l.b16 %v666
          %v699 = vunpack.c.l.b16 %v667
          %v700 = vunpack.c.l.b16 %v668
          %v701 = vunpack.c.l.b16 %v669
          %v702 = vunpack.c.l.b16 %v670
          %v703 = vunpack.c.l.b16 %v671
          %v704 = vunpack.c.l.b16 %v672
          %v705 = vunpack.c.l.b16 %v673
          %v706 = vunpack.c.l.b16 %v674
          %v707 = vunpack.c.l.b16 %v675
          %v708 = vunpack.c.l.b16 %v676
          %v709 = vpack.c.b16 %v694, %v693
          %v710 = vpack.c.b16 %v696, %v695
          %v711 = vpack.c.b16 %v698, %v697
          %v712 = vpack.c.b16 %v700, %v699
          %v713 = vpack.c.b16 %v702, %v701
          %v714 = vpack.c.b16 %v704, %v703
          %v715 = vpack.c.b16 %v706, %v705
          %v716 = vpack.c.b16 %v708, %v707
          %725 = vmatpush.bf16.msra.mxu0 %v716
          %726 = vmatpush.bf16.msra.mxu0 %v715
          %727 = vmatpush.bf16.msra.mxu0 %v714
          %728 = vmatpush.bf16.msra.mxu0 %v713
          %729 = vmatpush.bf16.msra.mxu0 %v712
          %730 = vmatpush.bf16.msra.mxu0 %v711
          %731 = vmatpush.bf16.msra.mxu0 %v710
          %732 = vmatpush.bf16.msra.mxu0 %v709
          %733 = vmatmul.bf16.gmra.mxu0 %v653
          %v734 = vpop.f32.mrf.mxu0
          %v735 = vadd.f32 0.0, %v734
          %v736 = vpop.f32.mrf.mxu0
          %v737 = vadd.f32 0.0, %v736
          %738 = vmatmul.bf16.gmra.mxu0 %v654
          %v739 = vpop.f32.mrf.mxu0
          %v740 = vadd.f32 0.0, %v739
          %v741 = vpop.f32.mrf.mxu0
          %v742 = vadd.f32 0.0, %v741
          %743 = vmatmul.bf16.gmra.mxu0 %v655
          %v744 = vpop.f32.mrf.mxu0
          %v745 = vadd.f32 0.0, %v744
          %v746 = vpop.f32.mrf.mxu0
          %v747 = vadd.f32 0.0, %v746
          %748 = vmatmul.bf16.gmra.mxu0 %v656
          %v749 = vpop.f32.mrf.mxu0
          %v750 = vadd.f32 0.0, %v749
          %v751 = vpop.f32.mrf.mxu0
          %v752 = vadd.f32 0.0, %v751
          %753 = vmatmul.bf16.gmra.mxu0 %v657
          %v754 = vpop.f32.mrf.mxu0
          %v755 = vadd.f32 0.0, %v754
          %v756 = vpop.f32.mrf.mxu0
          %v757 = vadd.f32 0.0, %v756
          %758 = vmatmul.bf16.gmra.mxu0 %v658
          %v759 = vpop.f32.mrf.mxu0
          %v760 = vadd.f32 0.0, %v759
          %v761 = vpop.f32.mrf.mxu0
          %v762 = vadd.f32 0.0, %v761
          %763 = vmatmul.bf16.gmra.mxu0 %v659
          %v764 = vpop.f32.mrf.mxu0
          %v765 = vadd.f32 0.0, %v764
          %v766 = vpop.f32.mrf.mxu0
          %v767 = vadd.f32 0.0, %v766
          %768 = vmatmul.bf16.gmra.mxu0 %v660
          %v769 = vpop.f32.mrf.mxu0
          %v770 = vadd.f32 0.0, %v769
          %v771 = vpop.f32.mrf.mxu0
          %v772 = vadd.f32 0.0, %v771
          %773 = vdwg.mxu0
          %v774 = vld [vmem:[#allocation2 + $0x2] sm:$0x1]
          %v775 = vadd.f32 %v735, %v737
          %v776 = vadd.f32 %v775, %v740
          %v777 = vadd.f32 %v776, %v742
          %v778 = vadd.f32 %v777, %v745
          %v779 = vadd.f32 %v778, %v747
          %v780 = vadd.f32 %v779, %v750
          %v781 = vadd.f32 %v780, %v752
          %v782 = vadd.f32 %v781, %v755
          %v783 = vadd.f32 %v782, %v757
          %v784 = vadd.f32 %v783, %v760
          %v785 = vadd.f32 %v784, %v762
          %v786 = vadd.f32 %v785, %v765
          %v787 = vadd.f32 %v786, %v767
          %v788 = vadd.f32 %v787, %v770
          %v789 = vadd.f32 %v788, %v772
          %v790 = vrot.slane %v789, 4
          %v791 = vadd.f32 %v789, %v790
          %v792 = vrot.slane %v791, 2
          %v793 = vadd.f32 %v791, %v792
          %v794 = vrot.slane %v793, 1
          %v795 = vadd.f32 %v793, %v794
          %v796 = vadd.f32 %v774, %v795
          %797 = vst [vmem:[#allocation2 + $0x2] sm:$0x1] %v796
          %v798 = vld [vmem:[#allocation2 + $0x3] sm:$0x1]
          %v799 = vmul.f32 %v735, %v735
          %v800 = vmul.f32 %v737, %v737
          %v801 = vmul.f32 %v740, %v740
          %v802 = vmul.f32 %v742, %v742
          %v803 = vmul.f32 %v745, %v745
          %v804 = vmul.f32 %v747, %v747
          %v805 = vmul.f32 %v750, %v750
          %v806 = vmul.f32 %v752, %v752
          %v807 = vmul.f32 %v755, %v755
          %v808 = vmul.f32 %v757, %v757
          %v809 = vmul.f32 %v760, %v760
          %v810 = vmul.f32 %v762, %v762
          %v811 = vmul.f32 %v765, %v765
          %v812 = vmul.f32 %v767, %v767
          %v813 = vmul.f32 %v770, %v770
          %v814 = vmul.f32 %v772, %v772
          %v815 = vadd.f32 %v799, %v800
          %v816 = vadd.f32 %v815, %v801
          %v817 = vadd.f32 %v816, %v802
          %v818 = vadd.f32 %v817, %v803
          %v819 = vadd.f32 %v818, %v804
          %v820 = vadd.f32 %v819, %v805
          %v821 = vadd.f32 %v820, %v806
          %v822 = vadd.f32 %v821, %v807
          %v823 = vadd.f32 %v822, %v808
          %v824 = vadd.f32 %v823, %v809
          %v825 = vadd.f32 %v824, %v810
          %v826 = vadd.f32 %v825, %v811
          %v827 = vadd.f32 %v826, %v812
          %v828 = vadd.f32 %v827, %v813
          %v829 = vadd.f32 %v828, %v814
          %v830 = vrot.slane %v829, 4
          %v831 = vadd.f32 %v829, %v830
          %v832 = vrot.slane %v831, 2
          %v833 = vadd.f32 %v831, %v832
          %v834 = vrot.slane %v833, 1
          %v835 = vadd.f32 %v833, %v834
          %v836 = vadd.f32 %v798, %v835
          %837 = vst [vmem:[#allocation2 + $0x3] sm:$0x1] %v836
        $region52: #{tpu_custom_call.1} parent=35 // pred_fallthru
          _
        %p838 = pnand %p597, %p222
        %p839 = pneg %p838
        // Predicated region
        $region53: #{tpu_custom_call.1} parent=35 // pred_check
          _
        $region54: #{tpu_custom_call.1} parent=35 // pred_check_branch
          %841 = sbr.rel (%p838) target = $region56
        $region55: #{tpu_custom_call.1} parent=35 // pred_region
          %v842 = vld [vmem:[#allocation2 + $0x2] sm:$0x1]
          %v843 = vmul.f32 %v842, 0.0078125
          %v844 = vld [vmem:[#allocation2 + $0x3] sm:$0x1]
          %v845 = vmul.f32 %v844, 0.0078125
          %v846 = vmul.f32 %v843, %v843
          %v847 = vsub.f32 %v845, %v846
          %v848 = vmax.f32 %v847, 0.0
          %v849 = vld [vmem:[%s3 + $0x2] sm:$0x1]
          %v850 = vadd.f32 %v848, 1e-05
          %v851 = vrsqrt.pop %v850
          %v852 = vmul.f32 %v851, %v850
          %v853 = vmul.f32 %v852, %v851
          %v854 = vmul.f32 0.5, %v853
          %v855 = vsub.f32 1.5, %v854
          %v856 = vmul.f32 %v851, %v855
          %vm857 = vweird.f32 %v850
          %vm858 = vweird.f32 %v851
          %vm859 = vmor %vm857, %vm858
          %v860 = vsel %vm859, %v851, %v856
          %v861 = vmul.f32 %v849, %v860
          %862 = vst [vmem:[#allocation2 + $0x6] sm:$0x1] %v861
          %v863 = vld [vmem:[%s3 + $0x3] sm:$0x1]
          %v864 = vmul.f32 %v843, %v861
          %v865 = vsub.f32 %v863, %v864
          %866 = vst [vmem:[#allocation2 + $0x7] sm:$0x1] %v865
        $region56: #{tpu_custom_call.1} parent=35 // pred_fallthru
          _
        // Predicated region
        $region57: #{tpu_custom_call.1} parent=35 // pred_check
          %p867 = pneg %p139
        $region58: #{tpu_custom_call.1} parent=35 // pred_check_branch
          %869 = sbr.rel (%p867) target = $region60
        $region59: #{tpu_custom_call.1} parent=35 // pred_region
          %871 = vsyncadd [#allocation3], 0
          %s873 = sshll.u32 [#allocation2], 4
          %s874 = int_to_ptr.vmem [resolvable:$true] %s873
          %s875 = sshll.u32 %s4, 4
          %s876 = int_to_ptr.hbm [resolvable:$true] %s875
          %878 = dma.vmem_to_hbm [thread:$0]  %s874, 128, %s876, [#allocation3]
        $region60: #{tpu_custom_call.1} parent=35 // pred_fallthru
          _
        // Predicated region
        $region61: #{tpu_custom_call.1} parent=35 // pred_check
          %p879 = pneg %p139
        $region62: #{tpu_custom_call.1} parent=35 // pred_check_branch
          %881 = sbr.rel (%p879) target = $region64
        $region63: #{tpu_custom_call.1} parent=35 // pred_region
          %883 = dma.done [#allocation3], 128
        $region64: #{tpu_custom_call.1} parent=35 // pred_fallthru
          _
      $region36: #{tpu_custom_call.1} parent=5 // pred_fallthru
        _
      %p884 = scmp.le.s32.totalorder 2, %s11
      // Predicated region
      $region65: #{tpu_custom_call.1} parent=5 // pred_check
        %p885 = pneg %p884
      $region66: #{tpu_custom_call.1} parent=5 // pred_check_branch
        %887 = sbr.rel (%p885) target = $region68
      $region67: #{tpu_custom_call.1} parent=5 // pred_region
        %s888 = ssub.s32 %s11, 2
      $region68: #{tpu_custom_call.1} parent=5 // pred_fallthru
        _
    $region6: #{tpu_custom_call.1} parent=1 // loop_footer
      %s15 = sadd.s32 1, %s11
    $region7: #{tpu_custom_call.1} parent=1 // loop_footer_branch
      %10 = sbr.rel target = $region3
    $region8: #{tpu_custom_call.1} parent=1 // loop_exit
      _
    %889 = vsyncpa [#allocation3], 1
    %s890 = scalar_lea.sflag [#allocation3], 1
    %891 = vsyncpa %s890, 1

</llo_original>
